<compile_context>
chip_gen: v7x
topology: tpu7x:2x2x1
jax: 0.10.0
libtpu: 0.0.40
codegen_flags: <defaults>
</compile_context>

<pallas_src>
import jax
import jax.numpy as jnp
from jax import lax
from jax.experimental import pallas as pl
from jax.experimental.pallas import tpu as pltpu


def _audio_encoder_kernel(w_ref, xsub_ref, out_ref):
    """One grid step = `m_block` batch rows.

    w_ref   : [2N, half]       stacked conv-weight halves [W1; W2] (compute dtype)
    xsub_ref: [MB, K+1, half]  input sub-frames, float32
    out_ref : [MB, N, K]       relu(conv1d) output, float32
    """
    mb, n_out, k_frames = out_ref.shape
    cdt = w_ref.dtype

    # Shared weights: loaded once per grid step (and only DMA'd once overall).
    w = w_ref[...]                                           # [2N, half]
    # Contract the `half` dims of both operands: [2N, half] x [K+1, half] -> [2N, K+1].
    dn = (((1,), (1,)), ((), ()))

    for m in range(mb):  # static, fully unrolled (mb is small)
        xm = xsub_ref[m].astype(cdt)                         # [K+1, half], cast once
        z = lax.dot_general(w, xm, dn,
                            preferred_element_type=jnp.float32)  # [2N, K+1] f32
        # out[:, k] = W1 @ sub[k] + W2 @ sub[k+1]  -> shift the W2 rows by one frame.
        y = z[:n_out, :k_frames] + z[n_out:, 1:]
        # Fused ReLU + single full-tile store (no read-modify-write).
        out_ref[m] = jnp.maximum(y, 0.0).astype(out_ref.dtype)


def audio_encoder_forward(x, w_conv, L, *, compute_dtype=jnp.bfloat16, m_block=1):
    """JAX/Pallas equivalent of audioEncoder.forward.

    x      : [M, T]      float32 waveform
    w_conv : [N, 1, L]   nn.Conv1d(1, N, kernel_size=L, stride=L//2, bias=False) weight
    returns: [M, N, K]   with K = (T - L) // (L // 2) + 1
    """
    M, T = x.shape
    N = w_conv.shape[0]
    half = L // 2
    assert T >= L, "input too short for one frame"
    K = (T - L) // half + 1
    assert M % m_block == 0, "m_block must divide the batch size"

    # Free, transpose-less reshape into overlapping-frame building blocks.
    x_sub = x[:, : (K + 1) * half].reshape(M, K + 1, half)       # [M, K+1, half]

    # Stack the two conv-weight halves once on the host (tiny) and cast.
    w = w_conv[:, 0, :]                                          # [N, L]
    w_cat = jnp.concatenate([w[:, :half], w[:, half:]], axis=0)  # [2N, half]
    w_cat = w_cat.astype(compute_dtype)

    out = pl.pallas_call(
        _audio_encoder_kernel,
        out_shape=jax.ShapeDtypeStruct((M, N, K), jnp.float32),
        grid=(M // m_block,),
        in_specs=[
            pl.BlockSpec((2 * N, half), lambda b: (0, 0)),                 # resident weights
            pl.BlockSpec((m_block, K + 1, half), lambda b: (b, 0, 0)),     # per-batch sub-frames
        ],
        out_specs=pl.BlockSpec((m_block, N, K), lambda b: (b, 0, 0)),
        compiler_params=pltpu.CompilerParams(
            dimension_semantics=("parallel",),
            vmem_limit_bytes=32 * 1024 * 1024,
        ),
    )(w_cat, x_sub)
    return out


def _reference_forward(x, w_conv, L):
    """Pure-JAX f32 reference mirroring the PyTorch semantics (for verification)."""
    M, T = x.shape
    half = L // 2
    K = (T - L) // half + 1
    sub = x[:, : (K + 1) * half].reshape(M, K + 1, half)
    w = w_conv[:, 0, :]                                          # [N, L]
    y = (jnp.einsum('nj,mkj->mnk', w[:, :half], sub[:, :K, :],
                    precision=lax.Precision.HIGHEST)
         + jnp.einsum('nj,mkj->mnk', w[:, half:], sub[:, 1:, :],
                      precision=lax.Precision.HIGHEST))
    return jnp.maximum(y, 0.0)


if __name__ == "__main__":
    # Small shapes consistent with the module: filter length L = 256 (half = 128,
    # lane-aligned), N = 64 encoder basis signals, batch M = 2, K = 8 frames.
    L, N = 256, 64
    M, K = 2, 8
    half = L // 2
    T = (K + 1) * half + 48          # 1200; the conv ignores the trailing 48 samples

    key = jax.random.PRNGKey(0)
    kx, kw = jax.random.split(key)
    x = jax.random.normal(kx, (M, T), dtype=jnp.float32)
    # Conv1d weight [N, 1, L]; scaled so outputs are O(1).
    w_conv = jax.random.normal(kw, (N, 1, L), dtype=jnp.float32) * (1.0 / 16.0)

    out = audio_encoder_forward(x, w_conv, L)                    # bf16 MXU, f32 accum
    out = jax.block_until_ready(out)

    ref = _reference_forward(x, w_conv, L)
    assert out.shape == (M, N, K), out.shape
    # bf16-level tolerance (documented): inputs are cast to bf16 for the MXU;
    # accumulation is f32.  Expected max abs error at these scales is ~1e-2.
    max_err = float(jnp.max(jnp.abs(out - ref)))
    assert jnp.allclose(out, ref, rtol=3e-2, atol=3e-2), max_err

    print("KERNEL_OK")
</pallas_src>

<mosaic_0001>
module attributes {stable_mosaic.version = 11 : i64} {
  func.func @_audio_encoder_kernel(%arg0: i32, %arg1: memref<128x128xbf16, #tpu.memory_space<vmem>>, %arg2: memref<1x9x128xf32, #tpu.memory_space<vmem>>, %arg3: memref<1x64x8xf32, #tpu.memory_space<vmem>>) attributes {dimension_semantics = [#tpu.dimension_semantics<parallel>], iteration_bounds = array<i64: 2>, scalar_prefetch = 0 : i64, scratch_operands = 0 : i64, tpu.core_type = #tpu.core_type<tc>, window_params = [{pipeline_mode = #tpu.pipeline_mode<synchronous>, transform_indices = @transform_0, window_bounds = array<i64: 128, 128>}, {transform_indices = @transform_1, window_bounds = array<i64: 1, 9, 128>}, {transform_indices = @transform_2, window_bounds = array<i64: 1, 64, 8>}]} {
    %c0 = arith.constant 0 : index
    %c0_0 = arith.constant 0 : index
    %0 = vector.load %arg1[%c0, %c0_0] : memref<128x128xbf16, #tpu.memory_space<vmem>>, vector<128x128xbf16>
    %c0_1 = arith.constant 0 : index
    %c0_2 = arith.constant 0 : index
    %c0_3 = arith.constant 0 : index
    %1 = vector.load %arg2[%c0_1, %c0_2, %c0_3] : memref<1x9x128xf32, #tpu.memory_space<vmem>>, vector<1x9x128xf32>
    %2 = vector.shape_cast %1 : vector<1x9x128xf32> to vector<9x128xf32>
    %3 = arith.truncf %2 : vector<9x128xf32> to vector<9x128xbf16>
    %cst = arith.constant dense<0.000000e+00> : vector<128x9xf32>
    %4 = tpu.matmul %0, %3, %cst {dimension_numbers = #tpu.dot_dimension_numbers<[1], [1], [0], [0], [0, 0, 1, 0], [], []>} : vector<128x128xbf16>, vector<9x128xbf16>, vector<128x9xf32> -> vector<128x9xf32>
    %5 = vector.extract_strided_slice %4 {offsets = [0, 0], sizes = [64, 8], strides = [1, 1]} : vector<128x9xf32> to vector<64x8xf32>
    %6 = vector.extract_strided_slice %4 {offsets = [64, 1], sizes = [64, 8], strides = [1, 1]} : vector<128x9xf32> to vector<64x8xf32>
    %7 = arith.addf %5, %6 : vector<64x8xf32>
    %cst_4 = arith.constant 0.000000e+00 : f32
    %8 = vector.broadcast %cst_4 : f32 to vector<64x8xf32>
    %9 = arith.maximumf %7, %8 : vector<64x8xf32>
    %c0_5 = arith.constant 0 : index
    %c0_6 = arith.constant 0 : index
    %c0_7 = arith.constant 0 : index
    %10 = vector.load %arg3[%c0_5, %c0_6, %c0_7] : memref<1x64x8xf32, #tpu.memory_space<vmem>>, vector<1x64x8xf32>
    %11 = vector.shape_cast %10 : vector<1x64x8xf32> to vector<64x8xf32>
    %12 = vector.shape_cast %9 : vector<64x8xf32> to vector<1x64x8xf32>
    tpu.vector_store %arg3[%c0_5, %c0_6, %c0_7], %12 {strides = array<i32>} : memref<1x64x8xf32, #tpu.memory_space<vmem>>, vector<1x64x8xf32>,
    return
  }
  func.func @transform_0(%arg0: i32) -> (i32, i32) {
    %c0_i32 = arith.constant 0 : i32
    %c0_i32_0 = arith.constant 0 : i32
    %c0_i32_1 = arith.constant 0 : i32
    return %c0_i32, %c0_i32_0 : i32, i32
  }
  func.func @transform_1(%arg0: i32) -> (i32, i32, i32) {
    %c0_i32 = arith.constant 0 : i32
    %c0_i32_0 = arith.constant 0 : i32
    %c0_i32_1 = arith.constant 0 : i32
    return %arg0, %c0_i32, %c0_i32_0 : i32, i32, i32
  }
  func.func @transform_2(%arg0: i32) -> (i32, i32, i32) {
    %c0_i32 = arith.constant 0 : i32
    %c0_i32_0 = arith.constant 0 : i32
    %c0_i32_1 = arith.constant 0 : i32
    return %arg0, %c0_i32, %c0_i32_0 : i32, i32, i32
  }
}

</mosaic_0001>

<llo_original>
// kernel: tpu_custom_call.1
$region0: #{tpu_custom_call.1}
  #allocation0 [shape = 'u32[]', space=smem, size = 0x4, offset = 0x4, fixed_abs, tag = 'smem constant byte address 0x4 - core index']
  #allocation1 [shape = 'u32[144,128]{1,0:T(1,128)}', space=vmem, size = 0x12000, scoped, tag = 'internal scratch']
  %s0 = inlined_call_operand.hbm [shape: bf16[128,128], index: 0, kind: input, shape index: {}]
  %s1 = inlined_call_operand.vmem [shape: f32[2,9,128], index: 1, kind: input, shape index: {}]
  %s2 = inlined_call_operand.vmem [shape: f32[2,64,8], index: 2, kind: output, shape index: {}]
  %s3 = sld [smem:[#allocation0]]
  $region45: #{tpu_custom_call.1} parent=0
    _
  %s5 = ssub.s32 1, %s3
  %s6 = scalar_select 0, %s5, %s3
  $region1: #{tpu_custom_call.1} parent=0
    #allocation2 [shape = 'u8[32768]{0}', space=vmem, size = 0x8000, scoped, tag = 'input window, operand 0, single buffered']
    #allocation3 [shape = 's32[2]{0}', space=sflag, size = 0x8, scoped, tag = 'scoped memory for tpu_custom_call.1']
    %7 = vsyncpa [#allocation3], 0
    loop: start=0, step=1, limit=4
    $region2: #{tpu_custom_call.1} parent=1 // loop_pre_header
      _
    $region3: #{tpu_custom_call.1} parent=1 // loop_header
      %s9 = sphi 0, %s13
      %p10 = scmp.ge.s32.totalorder %s9, 4
      %s17 = sphi 0, %s17
      %s19 = sphi 0, %s17
      %s20 = sphi 0, %s19
      %s34 = sphi 0, %s20
      %s40 = sphi 0, %s42
      %s43 = sphi 0, %s40
      %s44 = sphi 0, %s43
      %s60 = sphi 0, %s44
      %s66 = sphi 0, %s68
      %s69 = sphi 0, %s66
      %s70 = sphi 0, %s69
      %s86 = sphi 0, %s70
    $region4: #{tpu_custom_call.1} parent=1 // loop_header_branch
      %12 = sbr.rel (%p10) target = $region8
    $region5: #{tpu_custom_call.1} parent=1 // loop_body
      %s14 = ssub.s32 %s9, 1
      %s15 = ssub.s32 %s9, 2
      %s16 = sadd.s32 %s9, 1
      %s18 = sadd.s32 %s17, 1
      %p21 = scmp.eq.s32.totalorder %s9, 1
      %p22 = scmp.ne.s32.totalorder %s17, %s19
      %p23 = scmp.eq.s32.totalorder %s9, 0
      %p24 = por %p22, %p23
      %p25 = scmp.ne.s32.totalorder %s17, %s19
      %p26 = scmp.eq.s32.totalorder %s14, 1
      %p27 = por %p25, %p26
      %p28 = scmp.ne.s32.totalorder %s19, %s20
      %p29 = scmp.eq.s32.totalorder %s14, 0
      %p30 = por %p28, %p29
      %p31 = scmp.ne.s32.totalorder %s19, %s20
      %p32 = scmp.eq.s32.totalorder %s15, 1
      %p33 = por %p31, %p32
      %p35 = scmp.ne.s32.totalorder %s20, %s34
      %p36 = scmp.eq.s32.totalorder %s15, 0
      %p37 = por %p35, %p36
      %s38 = ssub.s32 %s9, %s16
      %p39 = scmp.eq.s32.totalorder %s38, 0
      %s41 = sadd.s32 %s40, 1
      %s42 = scalar_select %p39, %s40, %s41
      %p45 = pneg %p39
      %p46 = scmp.eq.s32.totalorder %s9, 1
      %p47 = por %p45, %p46
      %p48 = scmp.ne.s32.totalorder %s40, %s43
      %p49 = scmp.eq.s32.totalorder %s9, 0
      %p50 = por %p48, %p49
      %p51 = scmp.ne.s32.totalorder %s40, %s43
      %p52 = scmp.eq.s32.totalorder %s14, 1
      %p53 = por %p51, %p52
      %p54 = scmp.ne.s32.totalorder %s43, %s44
      %p55 = scmp.eq.s32.totalorder %s14, 0
      %p56 = por %p54, %p55
      %p57 = scmp.ne.s32.totalorder %s43, %s44
      %p58 = scmp.eq.s32.totalorder %s15, 1
      %p59 = por %p57, %p58
      %p61 = scmp.ne.s32.totalorder %s44, %s60
      %p62 = scmp.eq.s32.totalorder %s15, 0
      %p63 = por %p61, %p62
      %s64 = ssub.s32 %s9, %s16
      %p65 = scmp.eq.s32.totalorder %s64, 0
      %s67 = sadd.s32 %s66, 1
      %s68 = scalar_select %p65, %s66, %s67
      %p71 = pneg %p65
      %p72 = scmp.eq.s32.totalorder %s9, 1
      %p73 = por %p71, %p72
      %p74 = scmp.ne.s32.totalorder %s66, %s69
      %p75 = scmp.eq.s32.totalorder %s9, 0
      %p76 = por %p74, %p75
      %p77 = scmp.ne.s32.totalorder %s66, %s69
      %p78 = scmp.eq.s32.totalorder %s14, 1
      %p79 = por %p77, %p78
      %p80 = scmp.ne.s32.totalorder %s69, %s70
      %p81 = scmp.eq.s32.totalorder %s14, 0
      %p82 = por %p80, %p81
      %p83 = scmp.ne.s32.totalorder %s69, %s70
      %p84 = scmp.eq.s32.totalorder %s15, 1
      %p85 = por %p83, %p84
      %p87 = scmp.ne.s32.totalorder %s70, %s86
      %p88 = scmp.eq.s32.totalorder %s15, 0
      %p89 = por %p87, %p88
      %p90 = scmp.le.s32.totalorder 1, %s9
      %p91 = scmp.lt.s32.totalorder %s9, 3
      %p92 = pnand %p90, %p91
      %p93 = pneg %p92
      // Predicated region
      $region9: #{tpu_custom_call.1} parent=5 // pred_check
        _
      $region10: #{tpu_custom_call.1} parent=5 // pred_check_branch
        %95 = sbr.rel (%p92) target = $region12
      $region11: #{tpu_custom_call.1} parent=5 // pred_region
        %s96 = ssub.s32 %s9, 1
        // Predicated region
        $region13: #{tpu_custom_call.1} parent=11 // pred_check
          %p97 = pneg %p30
        $region14: #{tpu_custom_call.1} parent=11 // pred_check_branch
          %99 = sbr.rel (%p97) target = $region16
        $region15: #{tpu_custom_call.1} parent=11 // pred_region
          %s101 = ssub.s32 1024, 1024
          %102 = vsyncadd [#allocation3], %s101
          %s103 = sshll.u32 [#allocation2], 4
          %s104 = int_to_ptr.vmem [resolvable:$true] %s103
          %109 = dma.hbm_to_vmem [thread:$0]  %s0, 1024, %s104, [#allocation3], 64, 64, 4
        $region16: #{tpu_custom_call.1} parent=11 // pred_fallthru
          _
      $region12: #{tpu_custom_call.1} parent=5 // pred_fallthru
        _
      %p110 = scmp.lt.s32.totalorder %s9, 2
      // Predicated region
      $region17: #{tpu_custom_call.1} parent=5 // pred_check
        %p111 = pneg %p110
      $region18: #{tpu_custom_call.1} parent=5 // pred_check_branch
        %113 = sbr.rel (%p111) target = $region20
      $region19: #{tpu_custom_call.1} parent=5 // pred_region
        // Predicated region
        $region21: #{tpu_custom_call.1} parent=19 // pred_check
          %p114 = pneg %p50
        $region22: #{tpu_custom_call.1} parent=19 // pred_check_branch
          %116 = sbr.rel (%p114) target = $region24
        $region23: #{tpu_custom_call.1} parent=19 // pred_region
          %p117 = scmp.lt.s32.totalorder %s9, 1
          %s118 = scalar_select %p117, %s9, 1
          %s119 = smul.addr %s118, 2
          %s120 = smul.addr %s119, 8
          %s121 = scalar_lea.vmem %s1, %s120
        $region24: #{tpu_custom_call.1} parent=19 // pred_fallthru
          _
      $region20: #{tpu_custom_call.1} parent=5 // pred_fallthru
        _
      %p122 = scmp.le.s32.totalorder 1, %s9
      %p123 = scmp.lt.s32.totalorder %s9, 3
      %p124 = pnand %p122, %p123
      %p125 = pneg %p124
      // Predicated region
      $region25: #{tpu_custom_call.1} parent=5 // pred_check
        _
      $region26: #{tpu_custom_call.1} parent=5 // pred_check_branch
        %127 = sbr.rel (%p124) target = $region28
      $region27: #{tpu_custom_call.1} parent=5 // pred_region
        %s128 = ssub.s32 %s9, 1
        // Predicated region
        $region29: #{tpu_custom_call.1} parent=27 // pred_check
          %p129 = pneg %p30
        $region30: #{tpu_custom_call.1} parent=27 // pred_check_branch
          %131 = sbr.rel (%p129) target = $region32
        $region31: #{tpu_custom_call.1} parent=27 // pred_region
          %132 = dma.done [#allocation3], 1024
        $region32: #{tpu_custom_call.1} parent=27 // pred_fallthru
          _
        %p133 = pneg %p30
        %p134 = pneg %p27
        %p135 = scmp.lt.s32.totalorder %s14, 1
        %s136 = scalar_select %p135, %s14, 1
        %s137 = smul.addr %s136, 2
        %s138 = smul.addr %s137, 8
        %s139 = scalar_lea.vmem %s1, %s138
        %p140 = pneg %p56
        %p141 = pneg %p53
        %p142 = pneg %p82
        %p143 = pneg %p79
        %p144 = scmp.lt.s32.totalorder %s14, 1
        %s145 = scalar_select %p144, %s14, 1
        %s146 = smul.addr %s145, 8
        %s147 = smul.addr %s146, 8
        %s148 = scalar_lea.vmem %s2, %s147
        %p149 = scmp.lt.s32.totalorder %s14, 1
        %s150 = scalar_select %p149, %s14, 1
        %s151 = smul.addr %s150, 2
        %s152 = smul.addr %s151, 8
        %s153 = scalar_lea.vmem %s1, %s152
        %p154 = scmp.lt.s32.totalorder %s14, 1
        %s155 = scalar_select %p154, %s14, 1
        %s156 = smul.addr %s155, 8
        %s157 = smul.addr %s156, 8
        %s158 = scalar_lea.vmem %s2, %s157
        %v160 = vld [vmem:[#allocation2] sm:$0xf]
        %v161 = vld [vmem:[#allocation2 + $0x4] sm:$0xf]
        %v162 = vld [vmem:[#allocation2 + $0x8] sm:$0xf]
        %v163 = vld [vmem:[#allocation2 + $0xc] sm:$0xf]
        %v164 = vld [vmem:[#allocation2 + $0x10] sm:$0xf]
        %v165 = vld [vmem:[#allocation2 + $0x14] sm:$0xf]
        %v166 = vld [vmem:[#allocation2 + $0x18] sm:$0xf]
        %v167 = vld [vmem:[#allocation2 + $0x1c] sm:$0xf]
        %v168 = vld [vmem:[#allocation2 + $0x20] sm:$0xf]
        %v169 = vld [vmem:[#allocation2 + $0x24] sm:$0xf]
        %v170 = vld [vmem:[#allocation2 + $0x28] sm:$0xf]
        %v171 = vld [vmem:[#allocation2 + $0x2c] sm:$0xf]
        %v172 = vld [vmem:[#allocation2 + $0x30] sm:$0xf]
        %v173 = vld [vmem:[#allocation2 + $0x34] sm:$0xf]
        %v174 = vld [vmem:[#allocation2 + $0x38] sm:$0xf]
        %v175 = vld [vmem:[#allocation2 + $0x3c] sm:$0xf]
        %v176 = vld [vmem:[%s153] sm:$0xff]
        %v177 = vld [vmem:[%s153 + $0x8] sm:$0x1]
        %v178 = vpack.c.bf16 %v177, %v176
        %v195 = vunpack.c.l.b16 %v160
        %v196 = vunpack.c.l.b16 %v161
        %v197 = vunpack.c.l.b16 %v162
        %v198 = vunpack.c.l.b16 %v163
        %v199 = vunpack.c.l.b16 %v164
        %v200 = vunpack.c.l.b16 %v165
        %v201 = vunpack.c.l.b16 %v166
        %v202 = vunpack.c.l.b16 %v167
        %v203 = vunpack.c.l.b16 %v168
        %v204 = vunpack.c.l.b16 %v169
        %v205 = vunpack.c.l.b16 %v170
        %v206 = vunpack.c.l.b16 %v171
        %v207 = vunpack.c.l.b16 %v172
        %v208 = vunpack.c.l.b16 %v173
        %v209 = vunpack.c.l.b16 %v174
        %v210 = vunpack.c.l.b16 %v175
        %v211 = vpack.c.b16 %v196, %v195
        %v212 = vpack.c.b16 %v198, %v197
        %v213 = vpack.c.b16 %v200, %v199
        %v214 = vpack.c.b16 %v202, %v201
        %v215 = vpack.c.b16 %v204, %v203
        %v216 = vpack.c.b16 %v206, %v205
        %v217 = vpack.c.b16 %v208, %v207
        %v218 = vpack.c.b16 %v210, %v209
        %227 = vmatprep.subr.bf16.mxu0 0
        %228 = vmatpush1.bf16.xpose.msra.mxu0 %v178
        %229 = vmatprep.subr.bf16.mxu0 0
        %230 = vmatpush1.bf16.xpose.msra.mxu0 0
        %231 = vmatprep.subr.bf16.mxu0 0
        %232 = vmatpush1.bf16.xpose.msra.mxu0 0
        %233 = vmatprep.subr.bf16.mxu0 0
        %234 = vmatpush1.bf16.xpose.msra.mxu0 0
        %235 = vmatprep.subr.bf16.mxu0 0
        %236 = vmatpush1.bf16.xpose.msra.mxu0 0
        %237 = vmatprep.subr.bf16.mxu0 0
        %238 = vmatpush1.bf16.xpose.msra.mxu0 0
        %239 = vmatprep.subr.bf16.mxu0 0
        %240 = vmatpush1.bf16.xpose.msra.mxu0 0
        %241 = vmatprep.subr.bf16.mxu0 0
        %242 = vmatpush1.bf16.xpose.msra.mxu0 0
        %243 = vmatprep.subr.bf16.mxu0 0
        %244 = vmatpush1.bf16.xpose.msra.mxu0 0
        %245 = vmatprep.subr.bf16.mxu0 0
        %246 = vmatpush1.bf16.xpose.msra.mxu0 0
        %247 = vmatprep.subr.bf16.mxu0 0
        %248 = vmatpush1.bf16.xpose.msra.mxu0 0
        %249 = vmatprep.subr.bf16.mxu0 0
        %250 = vmatpush1.bf16.xpose.msra.mxu0 0
        %251 = vmatprep.subr.bf16.mxu0 0
        %252 = vmatpush1.bf16.xpose.msra.mxu0 0
        %253 = vmatprep.subr.bf16.mxu0 0
        %254 = vmatpush1.bf16.xpose.msra.mxu0 0
        %255 = vmatprep.subr.bf16.mxu0 0
        %256 = vmatpush1.bf16.xpose.msra.mxu0 0
        %257 = vmatprep.subr.bf16.mxu0 0
        %258 = vmatpush1.bf16.xpose.msra.mxu0 0
        %259 = vmatprep.mubr.bf16.mxu0 0
        %260 = vmatmul.mubr.bf16.gmra.mrb[0].mxu0 %v211
        %v261 = vpop.f32.mrb[0].mxu0
        %v262 = vadd.f32 0.0, %v261
        %v263 = vpop.f32.mrb[0].mxu0
        %v264 = vpop.f32.mrb[0].mxu0
        %v265 = vadd.f32 0.0, %v264
        %v266 = vpop.f32.mrb[0].mxu0
        %267 = vmatprep.mubr.bf16.mxu0 0
        %268 = vmatmul.mubr.bf16.gmra.mrb[0].mxu0 %v212
        %v269 = vpop.f32.mrb[0].mxu0
        %v270 = vadd.f32 0.0, %v269
        %v271 = vpop.f32.mrb[0].mxu0
        %v272 = vpop.f32.mrb[0].mxu0
        %v273 = vadd.f32 0.0, %v272
        %v274 = vpop.f32.mrb[0].mxu0
        %275 = vmatprep.mubr.bf16.mxu0 0
        %276 = vmatmul.mubr.bf16.gmra.mrb[0].mxu0 %v213
        %v277 = vpop.f32.mrb[0].mxu0
        %v278 = vadd.f32 0.0, %v277
        %v279 = vpop.f32.mrb[0].mxu0
        %v280 = vpop.f32.mrb[0].mxu0
        %v281 = vadd.f32 0.0, %v280
        %v282 = vpop.f32.mrb[0].mxu0
        %283 = vmatprep.mubr.bf16.mxu0 0
        %284 = vmatmul.mubr.bf16.gmra.mrb[0].mxu0 %v214
        %v285 = vpop.f32.mrb[0].mxu0
        %v286 = vadd.f32 0.0, %v285
        %v287 = vpop.f32.mrb[0].mxu0
        %v288 = vpop.f32.mrb[0].mxu0
        %v289 = vadd.f32 0.0, %v288
        %v290 = vpop.f32.mrb[0].mxu0
        %291 = vmatprep.mubr.bf16.mxu0 0
        %292 = vmatmul.mubr.bf16.gmra.mrb[0].mxu0 %v215
        %v293 = vpop.f32.mrb[0].mxu0
        %v294 = vadd.f32 0.0, %v293
        %v295 = vpop.f32.mrb[0].mxu0
        %v296 = vpop.f32.mrb[0].mxu0
        %v297 = vadd.f32 0.0, %v296
        %v298 = vpop.f32.mrb[0].mxu0
        %299 = vmatprep.mubr.bf16.mxu0 0
        %300 = vmatmul.mubr.bf16.gmra.mrb[0].mxu0 %v216
        %v301 = vpop.f32.mrb[0].mxu0
        %v302 = vadd.f32 0.0, %v301
        %v303 = vpop.f32.mrb[0].mxu0
        %v304 = vpop.f32.mrb[0].mxu0
        %v305 = vadd.f32 0.0, %v304
        %v306 = vpop.f32.mrb[0].mxu0
        %307 = vmatprep.mubr.bf16.mxu0 0
        %308 = vmatmul.mubr.bf16.gmra.mrb[0].mxu0 %v217
        %v309 = vpop.f32.mrb[0].mxu0
        %v310 = vadd.f32 0.0, %v309
        %v311 = vpop.f32.mrb[0].mxu0
        %v312 = vpop.f32.mrb[0].mxu0
        %v313 = vadd.f32 0.0, %v312
        %v314 = vpop.f32.mrb[0].mxu0
        %315 = vmatprep.mubr.bf16.mxu0 0
        %316 = vmatmul.mubr.bf16.gmra.mrb[0].mxu0 %v218
        %v317 = vpop.f32.mrb[0].mxu0
        %v318 = vadd.f32 0.0, %v317
        %v319 = vpop.f32.mrb[0].mxu0
        %v320 = vpop.f32.mrb[0].mxu0
        %v321 = vadd.f32 0.0, %v320
        %v322 = vpop.f32.mrb[0].mxu0
        %323 = vdwg.mxu0
        %332 = vrot.lane.b32.xlu0 %v294, 127
        %v333 = vpop.permute.xlu0 %332
        %334 = vrot.lane.b32.xlu0 %v297, 127
        %v335 = vpop.permute.xlu0 %334
        %336 = vrot.lane.b32.xlu0 %v302, 127
        %v337 = vpop.permute.xlu0 %336
        %338 = vrot.lane.b32.xlu0 %v305, 127
        %v339 = vpop.permute.xlu0 %338
        %340 = vrot.lane.b32.xlu0 %v310, 127
        %v341 = vpop.permute.xlu0 %340
        %342 = vrot.lane.b32.xlu0 %v313, 127
        %v343 = vpop.permute.xlu0 %342
        %344 = vrot.lane.b32.xlu0 %v318, 127
        %v345 = vpop.permute.xlu0 %344
        %346 = vrot.lane.b32.xlu0 %v321, 127
        %v347 = vpop.permute.xlu0 %346
        %v356 = vadd.f32 %v262, %v333
        %v357 = vadd.f32 %v265, %v335
        %v358 = vadd.f32 %v270, %v337
        %v359 = vadd.f32 %v273, %v339
        %v360 = vadd.f32 %v278, %v341
        %v361 = vadd.f32 %v281, %v343
        %v362 = vadd.f32 %v286, %v345
        %v363 = vadd.f32 %v289, %v347
        %v364 = vmax.f32 %v356, 0.0
        %v365 = vmax.f32 %v357, 0.0
        %v366 = vmax.f32 %v358, 0.0
        %v367 = vmax.f32 %v359, 0.0
        %v368 = vmax.f32 %v360, 0.0
        %v369 = vmax.f32 %v361, 0.0
        %v370 = vmax.f32 %v362, 0.0
        %v371 = vmax.f32 %v363, 0.0
        %vm372 = vcmask 64512
        %373 = vst.msk [vmem:[%s158] sm:$0xff] %vm372, %v364
        %374 = vst.msk [vmem:[%s158 + $0x8] sm:$0xff] %vm372, %v365
        %375 = vst.msk [vmem:[%s158 + $0x10] sm:$0xff] %vm372, %v366
        %376 = vst.msk [vmem:[%s158 + $0x18] sm:$0xff] %vm372, %v367
        %377 = vst.msk [vmem:[%s158 + $0x20] sm:$0xff] %vm372, %v368
        %378 = vst.msk [vmem:[%s158 + $0x28] sm:$0xff] %vm372, %v369
        %379 = vst.msk [vmem:[%s158 + $0x30] sm:$0xff] %vm372, %v370
        %380 = vst.msk [vmem:[%s158 + $0x38] sm:$0xff] %vm372, %v371
        %p381 = scmp.lt.s32.totalorder %s14, 1
        %s382 = scalar_select %p381, %s14, 1
        %s383 = smul.addr %s382, 8
        %s384 = smul.addr %s383, 8
        %s385 = scalar_lea.vmem %s2, %s384
        // Predicated region
        $region33: #{tpu_custom_call.1} parent=27 // pred_check
          %p386 = pneg %p79
        $region34: #{tpu_custom_call.1} parent=27 // pred_check_branch
          %388 = sbr.rel (%p386) target = $region36
        $region35: #{tpu_custom_call.1} parent=27 // pred_region
          _
        $region36: #{tpu_custom_call.1} parent=27 // pred_fallthru
          _
      $region28: #{tpu_custom_call.1} parent=5 // pred_fallthru
        _
      %p389 = scmp.le.s32.totalorder 2, %s9
      // Predicated region
      $region37: #{tpu_custom_call.1} parent=5 // pred_check
        %p390 = pneg %p389
      $region38: #{tpu_custom_call.1} parent=5 // pred_check_branch
        %392 = sbr.rel (%p390) target = $region40
      $region39: #{tpu_custom_call.1} parent=5 // pred_region
        %s393 = ssub.s32 %s9, 2
        // Predicated region
        $region41: #{tpu_custom_call.1} parent=39 // pred_check
          %p394 = pneg %p85
        $region42: #{tpu_custom_call.1} parent=39 // pred_check_branch
          %396 = sbr.rel (%p394) target = $region44
        $region43: #{tpu_custom_call.1} parent=39 // pred_region
          %p397 = scmp.lt.s32.totalorder %s15, 1
          %s398 = scalar_select %p397, %s15, 1
          %s399 = smul.addr %s398, 8
          %s400 = smul.addr %s399, 8
          %s401 = scalar_lea.vmem %s2, %s400
        $region44: #{tpu_custom_call.1} parent=39 // pred_fallthru
          _
      $region40: #{tpu_custom_call.1} parent=5 // pred_fallthru
        _
    $region6: #{tpu_custom_call.1} parent=1 // loop_footer
      %s13 = sadd.s32 1, %s9
    $region7: #{tpu_custom_call.1} parent=1 // loop_footer_branch
      %8 = sbr.rel target = $region3
    $region8: #{tpu_custom_call.1} parent=1 // loop_exit
      _
    %402 = vsyncpa [#allocation3], 1
    %s403 = scalar_lea.sflag [#allocation3], 1
    %404 = vsyncpa %s403, 1

</llo_original>
